<compile_context>
chip_gen: v6e
topology: v6e:2x2x1
jax: 0.10.0
libtpu: 0.0.40
codegen_flags: <defaults>
</compile_context>

<pallas_src>
import jax
import jax.numpy as jnp
import numpy as np
from jax.experimental import pallas as pl
from jax.experimental.pallas import tpu as pltpu


def _round_up(x, m):
    return ((x + m - 1) // m) * m


def wsgat_kernel(z_ref, esrc_ref, afeat_ref, efeat_ref, out_ref):
    """One grid step processes a tile of TS sentences.

    z_ref     : [Nw, Dp]     bf16  word projections (sentence-invariant, resident)
    esrc_ref  : [1, Nw]      f32   precomputed z @ a_src (sentence-invariant)
    afeat_ref : [1, F]       f32   folded attention weight  W_feat @ a_feat
    efeat_ref : [TS, Nw, F]  bf16  per-edge tfidf embeddings for this tile
    out_ref   : [TS, Dp]     f32
    """
    ts, nw, f = efeat_ref.shape

    # Edge-feature contribution to the attention scores: contract F on the
    # VPU/XLU (lane reduce).  An [*,F] x [F,1] matmul would waste all but one
    # MXU column, so keep the MXU free for the final alpha @ z.
    ef = efeat_ref[...].astype(jnp.float32)                       # [TS, Nw, F]
    a_feat = afeat_ref[...].reshape(1, 1, f)                      # [1, 1, F]
    e = jnp.sum(ef * a_feat, axis=-1)                             # [TS, Nw]

    # + source-node contribution (z @ a_src), hoisted to the wrapper.
    # (dst 'z' is never assigned in the module -> DGL zero-fills -> that
    #  attention term is identically zero and is dropped.)
    e = e + esrc_ref[...]                                         # [TS, Nw]

    # leaky_relu (PyTorch default negative_slope = 0.01)
    e = jnp.where(e > 0, e, 0.01 * e)

    # softmax over incoming word edges (lane axis)
    m = jnp.max(e, axis=-1, keepdims=True)                        # [TS, 1]
    p = jnp.exp(e - m)                                            # [TS, Nw]
    denom = jnp.sum(p, axis=-1, keepdims=True)                    # [TS, 1]
    alpha = p * pl.reciprocal(denom, approx=True)                 # [TS, Nw]

    # sh = sum_w alpha_w * z_w  ==  alpha @ z  (MXU matmul, f32 accumulation)
    sh = jnp.dot(alpha.astype(z_ref.dtype), z_ref[...],
                 preferred_element_type=jnp.float32)              # [TS, Dp]
    out_ref[...] = sh.astype(out_ref.dtype)


def wsgat_forward(h_w, efeat, w_fc, w_feat, w_attn, *, ts=None,
                  stream_dtype=jnp.bfloat16):
    """h_w: [Nw, in_dim], efeat: [Ns, Nw, F] -> returns [Ns, out_dim]."""
    Nw, in_dim = h_w.shape
    Ns, Nw2, F = efeat.shape
    assert Nw2 == Nw
    D = w_fc.shape[1]

    # ---- sentence-invariant work, hoisted out of the grid (computed once) ----
    z = jnp.dot(h_w.astype(jnp.float32), w_fc.astype(jnp.float32))    # [Nw, D]
    a_src = w_attn[:D, 0]
    # w_attn[D:2D] multiplies dst 'z', which DGL zero-fills -> term == 0.
    a_feat = w_attn[2 * D:, 0]
    e_src = (z @ a_src)[None, :].astype(jnp.float32)                  # [1, Nw]
    # Fold feat_fc into the attention vector:  efeat @ W_feat @ a_feat
    #                                        == efeat @ (W_feat @ a_feat)
    a_feat_eff = (w_feat.astype(jnp.float32) @ a_feat)[None, :]       # [1, F]

    # Pad out_dim to a lane-dense multiple of 128: dense MXU result tile and
    # unmasked stores of the output; padded columns are zeros (sliced below).
    Dp = max(128, _round_up(D, 128))
    z_p = jnp.pad(z, ((0, 0), (0, Dp - D)))

    # Stream the big operands in bf16; all accumulation stays f32 in-kernel.
    z_s = z_p.astype(stream_dtype)
    efeat_s = efeat.astype(stream_dtype)
    ebytes = jnp.dtype(stream_dtype).itemsize

    # ---- sentence tile size: amortize per-step overhead, budget VMEM ---------
    # VMEM cost of the [ts, Nw, F] bf16 block is governed by the padded
    # (sublane, lane) = (16, 128) tile, NOT the raw element count.
    sub = 16 if ebytes == 2 else 8
    per_sentence = _round_up(Nw, sub) * _round_up(F, 128) * ebytes
    resident = (2 * _round_up(Nw, sub) * Dp * ebytes           # z (buffered)
                + 2 * 8 * _round_up(Nw, 128) * 4               # e_src
                + 2 * 8 * _round_up(F, 128) * 4)               # a_feat_eff
    if ts is None:
        budget = 24 * 1024 * 1024          # headroom inside the 32 MiB limit
        per_step = 2 * per_sentence + 2 * Dp * 4   # dbl-buffered efeat + out
        ts = max(8, (budget - resident) // per_step)
        ts = min(256, (ts // 8) * 8)
    ts = min(ts, _round_up(Ns, 8))
    ts = max(8, (ts // 8) * 8)

    Ns_pad = _round_up(Ns, ts)
    if Ns_pad != Ns:
        efeat_s = jnp.concatenate(
            [efeat_s, jnp.zeros((Ns_pad - Ns, Nw, F), efeat_s.dtype)], axis=0)

    grid = (Ns_pad // ts,)

    out = pl.pallas_call(
        wsgat_kernel,
        out_shape=jax.ShapeDtypeStruct((Ns_pad, Dp), jnp.float32),
        grid=grid,
        in_specs=[
            pl.BlockSpec((Nw, Dp), lambda s: (0, 0)),          # z          (resident)
            pl.BlockSpec((1, Nw), lambda s: (0, 0)),           # e_src      (resident)
            pl.BlockSpec((1, F), lambda s: (0, 0)),            # a_feat_eff (resident)
            pl.BlockSpec((ts, Nw, F), lambda s: (s, 0, 0)),    # efeat tile (streams)
        ],
        out_specs=pl.BlockSpec((ts, Dp), lambda s: (s, 0)),
        compiler_params=pltpu.CompilerParams(
            dimension_semantics=("parallel",),                 # independent tiles
            vmem_limit_bytes=32 * 1024 * 1024,
        ),
    )(z_s, e_src, a_feat_eff, efeat_s)
    return out[:Ns, :D]


def wsgat_reference(h_w, efeat, w_fc, w_feat, w_attn):
    """Pure-JAX f32 reference mirroring the PyTorch/DGL semantics."""
    Ns, Nw, F = efeat.shape
    D = w_fc.shape[1]
    z = h_w @ w_fc                                               # [Nw, D]
    z_dst = jnp.zeros((Ns, D), jnp.float32)                      # DGL zero-fill
    dfeat = jnp.einsum("swf,fd->swd", efeat, w_feat)             # [Ns, Nw, D]
    a_src, a_dst, a_feat = w_attn[:D, 0], w_attn[D:2 * D, 0], w_attn[2 * D:, 0]
    e = (z @ a_src)[None, :] + (z_dst @ a_dst)[:, None] \
        + jnp.einsum("swd,d->sw", dfeat, a_feat)
    e = jax.nn.leaky_relu(e, negative_slope=0.01)
    alpha = jax.nn.softmax(e, axis=1)                            # over incoming words
    return alpha @ z                                             # [Ns, D]


if __name__ == "__main__":
    # Small shapes consistent with the module.
    Nw, Ns = 16, 8                    # word nodes, sentence nodes
    in_dim, out_dim, feat_embed = 32, 32, 16

    key = jax.random.PRNGKey(0)
    k1, k2, k3, k4, k5 = jax.random.split(key, 5)

    # Deterministic "parameters" (nn.Linear weights, bias=False).
    w_fc = jax.random.normal(k1, (in_dim, out_dim), jnp.float32) * 0.1        # fc
    w_feat = jax.random.normal(k2, (feat_embed, out_dim), jnp.float32) * 0.1  # feat_fc
    w_attn = jax.random.normal(k3, (3 * out_dim, 1), jnp.float32) * 0.1       # attn_fc

    # Inputs: word-node features and per-edge tfidf embeddings (dense bipartite).
    # TODO(synk): real SAPGraph edges are sparse; a dense bipartite graph is assumed.
    h_w = jax.random.normal(k4, (Nw, in_dim), jnp.float32)
    efeat = jax.random.normal(k5, (Ns, Nw, feat_embed), jnp.float32)

    out = wsgat_forward(h_w, efeat, w_fc, w_feat, w_attn)
    out = jax.block_until_ready(out)

    ref = wsgat_reference(h_w, efeat, w_fc, w_feat, w_attn)
    # bf16 streaming of efeat / z -> compare against the f32 reference with a
    # correspondingly looser tolerance.
    np.testing.assert_allclose(np.asarray(out), np.asarray(ref),
                               rtol=2e-2, atol=2e-2)

    print("KERNEL_OK")
</pallas_src>

<mosaic_0001>
module attributes {stable_mosaic.version = 11 : i64} {
  func.func @wsgat_kernel(%arg0: i32, %arg1: memref<16x128xbf16, #tpu.memory_space<vmem>>, %arg2: memref<1x16xf32, #tpu.memory_space<vmem>>, %arg3: memref<1x16xf32, #tpu.memory_space<vmem>>, %arg4: memref<8x16x16xbf16, #tpu.memory_space<vmem>>, %arg5: memref<8x128xf32, #tpu.memory_space<vmem>>) attributes {dimension_semantics = [#tpu.dimension_semantics<parallel>], iteration_bounds = array<i64: 1>, scalar_prefetch = 0 : i64, scratch_operands = 0 : i64, tpu.core_type = #tpu.core_type<tc>, window_params = [{pipeline_mode = #tpu.pipeline_mode<synchronous>, transform_indices = @transform_0, window_bounds = array<i64: 16, 128>}, {pipeline_mode = #tpu.pipeline_mode<synchronous>, transform_indices = @transform_1, window_bounds = array<i64: 1, 16>}, {pipeline_mode = #tpu.pipeline_mode<synchronous>, transform_indices = @transform_2, window_bounds = array<i64: 1, 16>}, {transform_indices = @transform_3, window_bounds = array<i64: 8, 16, 16>}, {transform_indices = @transform_4, window_bounds = array<i64: 8, 128>}]} {
    %c0 = arith.constant 0 : index
    %c0_0 = arith.constant 0 : index
    %c0_1 = arith.constant 0 : index
    %0 = vector.load %arg4[%c0, %c0_0, %c0_1] : memref<8x16x16xbf16, #tpu.memory_space<vmem>>, vector<8x16x16xbf16>
    %1 = arith.extf %0 : vector<8x16x16xbf16> to vector<8x16x16xf32>
    %c0_2 = arith.constant 0 : index
    %c0_3 = arith.constant 0 : index
    %2 = vector.load %arg3[%c0_2, %c0_3] : memref<1x16xf32, #tpu.memory_space<vmem>>, vector<1x16xf32>
    %3 = vector.shape_cast %2 : vector<1x16xf32> to vector<1x1x16xf32>
    %4 = vector.broadcast %3 : vector<1x1x16xf32> to vector<8x16x16xf32>
    %5 = arith.mulf %1, %4 : vector<8x16x16xf32>
    %cst = arith.constant dense<0.000000e+00> : vector<8x16xf32>
    %6 = vector.multi_reduction <add>, %5, %cst [2] : vector<8x16x16xf32> to vector<8x16xf32>
    %c0_4 = arith.constant 0 : index
    %c0_5 = arith.constant 0 : index
    %7 = vector.load %arg2[%c0_4, %c0_5] : memref<1x16xf32, #tpu.memory_space<vmem>>, vector<1x16xf32>
    %8 = vector.broadcast %7 : vector<1x16xf32> to vector<8x16xf32>
    %9 = arith.addf %6, %8 : vector<8x16xf32>
    %cst_6 = arith.constant 0.000000e+00 : f32
    %10 = vector.broadcast %cst_6 : f32 to vector<8x16xf32>
    %11 = arith.cmpf ogt, %9, %10 : vector<8x16xf32>
    %cst_7 = arith.constant 0.00999999977 : f32
    %12 = vector.broadcast %cst_7 : f32 to vector<8x16xf32>
    %13 = arith.mulf %12, %9 : vector<8x16xf32>
    %14 = arith.select %11, %9, %13 : vector<8x16xi1>, vector<8x16xf32>
    %cst_8 = arith.constant dense<0xFF800000> : vector<8xf32>
    %15 = vector.multi_reduction <maximumf>, %14, %cst_8 [1] : vector<8x16xf32> to vector<8xf32>
    %16 = vector.shape_cast %15 : vector<8xf32> to vector<8x1xf32>
    %17 = vector.broadcast %16 : vector<8x1xf32> to vector<8x16xf32>
    %18 = arith.subf %14, %17 : vector<8x16xf32>
    %19 = math.exp %18 : vector<8x16xf32>
    %cst_9 = arith.constant dense<0.000000e+00> : vector<8xf32>
    %20 = vector.multi_reduction <add>, %19, %cst_9 [1] : vector<8x16xf32> to vector<8xf32>
    %21 = vector.shape_cast %20 : vector<8xf32> to vector<8x1xf32>
    %22 = tpu.reciprocal %21 {approx = true} : vector<8x1xf32> -> vector<8x1xf32>
    %23 = vector.broadcast %22 : vector<8x1xf32> to vector<8x16xf32>
    %24 = arith.mulf %19, %23 : vector<8x16xf32>
    %25 = arith.truncf %24 : vector<8x16xf32> to vector<8x16xbf16>
    %c0_10 = arith.constant 0 : index
    %c0_11 = arith.constant 0 : index
    %26 = vector.load %arg1[%c0_10, %c0_11] : memref<16x128xbf16, #tpu.memory_space<vmem>>, vector<16x128xbf16>
    %cst_12 = arith.constant dense<0.000000e+00> : vector<8x128xf32>
    %27 = tpu.matmul %25, %26, %cst_12 {dimension_numbers = #tpu.dot_dimension_numbers<[1], [0], [0], [1], [0, 0, 1, 1], [], []>} : vector<8x16xbf16>, vector<16x128xbf16>, vector<8x128xf32> -> vector<8x128xf32>
    %c0_13 = arith.constant 0 : index
    %c0_14 = arith.constant 0 : index
    %28 = vector.load %arg5[%c0_13, %c0_14] : memref<8x128xf32, #tpu.memory_space<vmem>>, vector<8x128xf32>
    tpu.vector_store %arg5[%c0_13, %c0_14], %27 {strides = array<i32>} : memref<8x128xf32, #tpu.memory_space<vmem>>, vector<8x128xf32>,
    return
  }
  func.func @transform_0(%arg0: i32) -> (i32, i32) {
    %c0_i32 = arith.constant 0 : i32
    %c0_i32_0 = arith.constant 0 : i32
    %c0_i32_1 = arith.constant 0 : i32
    return %c0_i32, %c0_i32_0 : i32, i32
  }
  func.func @transform_1(%arg0: i32) -> (i32, i32) {
    %c0_i32 = arith.constant 0 : i32
    %c0_i32_0 = arith.constant 0 : i32
    %c0_i32_1 = arith.constant 0 : i32
    return %c0_i32, %c0_i32_0 : i32, i32
  }
  func.func @transform_2(%arg0: i32) -> (i32, i32) {
    %c0_i32 = arith.constant 0 : i32
    %c0_i32_0 = arith.constant 0 : i32
    %c0_i32_1 = arith.constant 0 : i32
    return %c0_i32, %c0_i32_0 : i32, i32
  }
  func.func @transform_3(%arg0: i32) -> (i32, i32, i32) {
    %c0_i32 = arith.constant 0 : i32
    %c0_i32_0 = arith.constant 0 : i32
    %c0_i32_1 = arith.constant 0 : i32
    return %arg0, %c0_i32, %c0_i32_0 : i32, i32, i32
  }
  func.func @transform_4(%arg0: i32) -> (i32, i32) {
    %c0_i32 = arith.constant 0 : i32
    %c0_i32_0 = arith.constant 0 : i32
    return %arg0, %c0_i32 : i32, i32
  }
}

</mosaic_0001>

<llo_original>
// kernel: tpu_custom_call.1
$region0: #{tpu_custom_call.1}
  #allocation0 [shape = 'u32[]', space=smem, size = 0x4, offset = 0x4, fixed_abs, tag = 'smem constant byte address 0x4 - core index']
  #allocation1 [shape = 'u32[144,128]{1,0:T(1,128)}', space=vmem, size = 0x12000, scoped, tag = 'internal scratch']
  %s0 = inlined_call_operand.hbm [shape: bf16[16,128], index: 0, kind: input, shape index: {}]
  %s1 = inlined_call_operand.vmem [shape: f32[1,16], index: 1, kind: input, shape index: {}]
  %s2 = inlined_call_operand.vmem [shape: f32[1,16], index: 2, kind: input, shape index: {}]
  %s3 = inlined_call_operand.hbm [shape: bf16[8,16,16], index: 3, kind: input, shape index: {}]
  %s4 = inlined_call_operand.hbm [shape: f32[8,128], index: 4, kind: output, shape index: {}]
  %s5 = sld [smem:[#allocation0]]
  $region34: #{tpu_custom_call.1} parent=0
    _
  %s7 = ssub.s32 1, %s5
  %s8 = scalar_select 0, %s7, %s5
  $region1: #{tpu_custom_call.1} parent=0
    #allocation2 [shape = 'u8[4096]{0}', space=vmem, size = 0x1000, scoped, tag = 'input window, operand 0, single buffered']
    #allocation3 [shape = 's32[1]{0}', space=sflag, size = 0x4, scoped, tag = 'scoped memory for tpu_custom_call.1']
    #allocation4 [shape = 's32[1]{0}', space=sflag, size = 0x4, scoped, tag = 'scoped memory for tpu_custom_call.1']
    #allocation5 [shape = 'u8[32768]{0}', space=vmem, size = 0x8000, scoped, tag = 'input window, operand 3, single buffered']
    #allocation6 [shape = 's32[1]{0}', space=sflag, size = 0x4, scoped, tag = 'scoped memory for tpu_custom_call.1']
    #allocation7 [shape = 'u8[4096]{0}', space=vmem, size = 0x1000, scoped, tag = 'output window, operand 0, single buffered']
    %9 = vsyncpa [#allocation3], 0
    %10 = vsyncpa [#allocation6], 0
    %11 = vsyncpa [#allocation4], 0
    // Predicated region
    $region2: #{tpu_custom_call.1} parent=1 // pred_check
      _
    $region3: #{tpu_custom_call.1} parent=1 // pred_check_branch
      %13 = sbr.rel (0) target = $region5
    $region4: #{tpu_custom_call.1} parent=1 // pred_region
      %s15 = ssub.s32 128, 128
      %16 = vsyncadd [#allocation3], %s15
      %s17 = sshll.u32 [#allocation2], 4
      %s18 = int_to_ptr.vmem [resolvable:$true] %s17
      %23 = dma.hbm_to_vmem [thread:$0]  %s0, 128, %s18, [#allocation3], 64, 64, 4
    $region5: #{tpu_custom_call.1} parent=1 // pred_fallthru
      _
    // Predicated region
    $region6: #{tpu_custom_call.1} parent=1 // pred_check
      _
    $region7: #{tpu_custom_call.1} parent=1 // pred_check_branch
      %25 = sbr.rel (0) target = $region9
    $region8: #{tpu_custom_call.1} parent=1 // pred_region
      _
    $region9: #{tpu_custom_call.1} parent=1 // pred_fallthru
      _
    // Predicated region
    $region10: #{tpu_custom_call.1} parent=1 // pred_check
      _
    $region11: #{tpu_custom_call.1} parent=1 // pred_check_branch
      %27 = sbr.rel (0) target = $region13
    $region12: #{tpu_custom_call.1} parent=1 // pred_region
      _
    $region13: #{tpu_custom_call.1} parent=1 // pred_fallthru
      _
    // Predicated region
    $region14: #{tpu_custom_call.1} parent=1 // pred_check
      _
    $region15: #{tpu_custom_call.1} parent=1 // pred_check_branch
      %29 = sbr.rel (0) target = $region17
    $region16: #{tpu_custom_call.1} parent=1 // pred_region
      %s31 = ssub.s32 1024, 1024
      %32 = vsyncadd [#allocation6], %s31
      %s33 = sshll.u32 [#allocation5], 4
      %s34 = int_to_ptr.vmem [resolvable:$true] %s33
      %39 = dma.hbm_to_vmem [thread:$0]  %s3, 1024, %s34, [#allocation6], 64, 64, 4
    $region17: #{tpu_custom_call.1} parent=1 // pred_fallthru
      _
    // Predicated region
    $region18: #{tpu_custom_call.1} parent=1 // pred_check
      _
    $region19: #{tpu_custom_call.1} parent=1 // pred_check_branch
      %41 = sbr.rel (0) target = $region21
    $region20: #{tpu_custom_call.1} parent=1 // pred_region
      %42 = dma.done [#allocation3], 128
    $region21: #{tpu_custom_call.1} parent=1 // pred_fallthru
      _
    // Predicated region
    $region22: #{tpu_custom_call.1} parent=1 // pred_check
      _
    $region23: #{tpu_custom_call.1} parent=1 // pred_check_branch
      %44 = sbr.rel (0) target = $region25
    $region24: #{tpu_custom_call.1} parent=1 // pred_region
      %45 = dma.done [#allocation6], 1024
    $region25: #{tpu_custom_call.1} parent=1 // pred_fallthru
      _
    %v47 = vld [vmem:[#allocation5] sm:$0xf]
    %v48 = vld [vmem:[#allocation5 + $0x4] sm:$0xf]
    %v49 = vld [vmem:[#allocation5 + $0x8] sm:$0xf]
    %v50 = vld [vmem:[#allocation5 + $0xc] sm:$0xf]
    %v51 = vld [vmem:[#allocation5 + $0x10] sm:$0xf]
    %v52 = vld [vmem:[#allocation5 + $0x14] sm:$0xf]
    %v53 = vld [vmem:[#allocation5 + $0x18] sm:$0xf]
    %v54 = vld [vmem:[#allocation5 + $0x1c] sm:$0xf]
    %v55 = vld [vmem:[#allocation5 + $0x20] sm:$0xf]
    %v56 = vld [vmem:[#allocation5 + $0x24] sm:$0xf]
    %v57 = vld [vmem:[#allocation5 + $0x28] sm:$0xf]
    %v58 = vld [vmem:[#allocation5 + $0x2c] sm:$0xf]
    %v59 = vld [vmem:[#allocation5 + $0x30] sm:$0xf]
    %v60 = vld [vmem:[#allocation5 + $0x34] sm:$0xf]
    %v61 = vld [vmem:[#allocation5 + $0x38] sm:$0xf]
    %v62 = vld [vmem:[#allocation5 + $0x3c] sm:$0xf]
    %v63 = vunpack.c.l.bf16 %v47
    %v64 = vunpack.c.l.bf16 %v48
    %v65 = vunpack.c.l.bf16 %v49
    %v66 = vunpack.c.l.bf16 %v50
    %v67 = vunpack.c.l.bf16 %v51
    %v68 = vunpack.c.l.bf16 %v52
    %v69 = vunpack.c.l.bf16 %v53
    %v70 = vunpack.c.l.bf16 %v54
    %v71 = vunpack.c.l.bf16 %v55
    %v72 = vunpack.c.l.bf16 %v56
    %v73 = vunpack.c.l.bf16 %v57
    %v74 = vunpack.c.l.bf16 %v58
    %v75 = vunpack.c.l.bf16 %v59
    %v76 = vunpack.c.l.bf16 %v60
    %v77 = vunpack.c.l.bf16 %v61
    %v78 = vunpack.c.l.bf16 %v62
    %v79 = vld [vmem:[%s2] sm:$0x1]
    %v81 = vlaneseq
    %v82 = vshrl.u32 %v81, 7
    %v83 = vsub.s32 0, %v82
    %v84 = vrot.slane %v79, %v83
    %v86 = vmul.f32 %v63, %v84
    %v87 = vmul.f32 %v64, %v84
    %v88 = vmul.f32 %v65, %v84
    %v89 = vmul.f32 %v66, %v84
    %v90 = vmul.f32 %v67, %v84
    %v91 = vmul.f32 %v68, %v84
    %v92 = vmul.f32 %v69, %v84
    %v93 = vmul.f32 %v70, %v84
    %v94 = vmul.f32 %v71, %v84
    %v95 = vmul.f32 %v72, %v84
    %v96 = vmul.f32 %v73, %v84
    %v97 = vmul.f32 %v74, %v84
    %v98 = vmul.f32 %v75, %v84
    %v99 = vmul.f32 %v76, %v84
    %v100 = vmul.f32 %v77, %v84
    %v101 = vmul.f32 %v78, %v84
    %vm102 = vcmask 130048
    %v103 = vsel %vm102, %v86, 0.0
    %104 = vadd.xlane.f32.xlu0 %v103
    %v105 = vpop.xlane.xlu0 %104
    %v106 = vsel %vm102, %v87, 0.0
    %107 = vadd.xlane.f32.xlu0 %v106
    %v108 = vpop.xlane.xlu0 %107
    %v109 = vsel %vm102, %v88, 0.0
    %110 = vadd.xlane.f32.xlu0 %v109
    %v111 = vpop.xlane.xlu0 %110
    %v112 = vsel %vm102, %v89, 0.0
    %113 = vadd.xlane.f32.xlu0 %v112
    %v114 = vpop.xlane.xlu0 %113
    %v115 = vsel %vm102, %v90, 0.0
    %116 = vadd.xlane.f32.xlu0 %v115
    %v117 = vpop.xlane.xlu0 %116
    %v118 = vsel %vm102, %v91, 0.0
    %119 = vadd.xlane.f32.xlu0 %v118
    %v120 = vpop.xlane.xlu0 %119
    %v121 = vsel %vm102, %v92, 0.0
    %122 = vadd.xlane.f32.xlu0 %v121
    %v123 = vpop.xlane.xlu0 %122
    %v124 = vsel %vm102, %v93, 0.0
    %125 = vadd.xlane.f32.xlu0 %v124
    %v126 = vpop.xlane.xlu0 %125
    %v127 = vsel %vm102, %v94, 0.0
    %128 = vadd.xlane.f32.xlu0 %v127
    %v129 = vpop.xlane.xlu0 %128
    %v130 = vsel %vm102, %v95, 0.0
    %131 = vadd.xlane.f32.xlu0 %v130
    %v132 = vpop.xlane.xlu0 %131
    %v133 = vsel %vm102, %v96, 0.0
    %134 = vadd.xlane.f32.xlu0 %v133
    %v135 = vpop.xlane.xlu0 %134
    %v136 = vsel %vm102, %v97, 0.0
    %137 = vadd.xlane.f32.xlu0 %v136
    %v138 = vpop.xlane.xlu0 %137
    %v139 = vsel %vm102, %v98, 0.0
    %140 = vadd.xlane.f32.xlu0 %v139
    %v141 = vpop.xlane.xlu0 %140
    %v142 = vsel %vm102, %v99, 0.0
    %143 = vadd.xlane.f32.xlu0 %v142
    %v144 = vpop.xlane.xlu0 %143
    %v145 = vsel %vm102, %v100, 0.0
    %146 = vadd.xlane.f32.xlu0 %v145
    %v147 = vpop.xlane.xlu0 %146
    %v148 = vsel %vm102, %v101, 0.0
    %149 = vadd.xlane.f32.xlu0 %v148
    %v150 = vpop.xlane.xlu0 %149
    %v151 = vld [vmem:[%s1] sm:$0x1]
    %v153 = vlaneseq
    %v154 = vshrl.u32 %v153, 7
    %v155 = vsub.s32 0, %v154
    %v156 = vrot.slane %v151, %v155
    %158 = vbcast.lane.b32.xlu0 %v156, 256
    %v159 = vpop.permute.xlu0 %158
    %s161 = sor.u32 256, 8
    %162 = vbcast.lane.b32.xlu0 %v156, %s161
    %v163 = vpop.permute.xlu0 %162
    %v166 = vadd.f32 %v105, %v159
    %v167 = vadd.f32 %v108, %v163
    %v168 = vadd.f32 %v111, %v159
    %v169 = vadd.f32 %v114, %v163
    %v170 = vadd.f32 %v117, %v159
    %v171 = vadd.f32 %v120, %v163
    %v172 = vadd.f32 %v123, %v159
    %v173 = vadd.f32 %v126, %v163
    %v174 = vadd.f32 %v129, %v159
    %v175 = vadd.f32 %v132, %v163
    %v176 = vadd.f32 %v135, %v159
    %v177 = vadd.f32 %v138, %v163
    %v178 = vadd.f32 %v141, %v159
    %v179 = vadd.f32 %v144, %v163
    %v180 = vadd.f32 %v147, %v159
    %v181 = vadd.f32 %v150, %v163
    %vm182 = vcmp.gt.f32.partialorder %v166, 0.0
    %vm183 = vcmp.gt.f32.partialorder %v167, 0.0
    %vm184 = vcmp.gt.f32.partialorder %v168, 0.0
    %vm185 = vcmp.gt.f32.partialorder %v169, 0.0
    %vm186 = vcmp.gt.f32.partialorder %v170, 0.0
    %vm187 = vcmp.gt.f32.partialorder %v171, 0.0
    %vm188 = vcmp.gt.f32.partialorder %v172, 0.0
    %vm189 = vcmp.gt.f32.partialorder %v173, 0.0
    %vm190 = vcmp.gt.f32.partialorder %v174, 0.0
    %vm191 = vcmp.gt.f32.partialorder %v175, 0.0
    %vm192 = vcmp.gt.f32.partialorder %v176, 0.0
    %vm193 = vcmp.gt.f32.partialorder %v177, 0.0
    %vm194 = vcmp.gt.f32.partialorder %v178, 0.0
    %vm195 = vcmp.gt.f32.partialorder %v179, 0.0
    %vm196 = vcmp.gt.f32.partialorder %v180, 0.0
    %vm197 = vcmp.gt.f32.partialorder %v181, 0.0
    %v198 = vmul.f32 %v166, 0.01
    %v199 = vmul.f32 %v167, 0.01
    %v200 = vmul.f32 %v168, 0.01
    %v201 = vmul.f32 %v169, 0.01
    %v202 = vmul.f32 %v170, 0.01
    %v203 = vmul.f32 %v171, 0.01
    %v204 = vmul.f32 %v172, 0.01
    %v205 = vmul.f32 %v173, 0.01
    %v206 = vmul.f32 %v174, 0.01
    %v207 = vmul.f32 %v175, 0.01
    %v208 = vmul.f32 %v176, 0.01
    %v209 = vmul.f32 %v177, 0.01
    %v210 = vmul.f32 %v178, 0.01
    %v211 = vmul.f32 %v179, 0.01
    %v212 = vmul.f32 %v180, 0.01
    %v213 = vmul.f32 %v181, 0.01
    %v214 = vsel %vm182, %v166, %v198
    %v215 = vsel %vm183, %v167, %v199
    %v216 = vsel %vm184, %v168, %v200
    %v217 = vsel %vm185, %v169, %v201
    %v218 = vsel %vm186, %v170, %v202
    %v219 = vsel %vm187, %v171, %v203
    %v220 = vsel %vm188, %v172, %v204
    %v221 = vsel %vm189, %v173, %v205
    %v222 = vsel %vm190, %v174, %v206
    %v223 = vsel %vm191, %v175, %v207
    %v224 = vsel %vm192, %v176, %v208
    %v225 = vsel %vm193, %v177, %v209
    %v226 = vsel %vm194, %v178, %v210
    %v227 = vsel %vm195, %v179, %v211
    %v228 = vsel %vm196, %v180, %v212
    %v229 = vsel %vm197, %v181, %v213
    %246 = vset.pattern.permute.xlu0 0
    %247 = vperm.xlu0 %246, %v214
    %v248 = vpop.permute.xlu0 %247
    %249 = vset.pattern.permute.xlu0 0
    %250 = vperm.xlu0 %249, %v215
    %v251 = vpop.permute.xlu0 %250
    %252 = vset.pattern.permute.xlu0 0
    %253 = vperm.xlu0 %252, %v216
    %v254 = vpop.permute.xlu0 %253
    %255 = vset.pattern.permute.xlu0 0
    %256 = vperm.xlu0 %255, %v217
    %v257 = vpop.permute.xlu0 %256
    %258 = vset.pattern.permute.xlu0 0
    %259 = vperm.xlu0 %258, %v218
    %v260 = vpop.permute.xlu0 %259
    %261 = vset.pattern.permute.xlu0 0
    %262 = vperm.xlu0 %261, %v219
    %v263 = vpop.permute.xlu0 %262
    %264 = vset.pattern.permute.xlu0 0
    %265 = vperm.xlu0 %264, %v220
    %v266 = vpop.permute.xlu0 %265
    %267 = vset.pattern.permute.xlu0 0
    %268 = vperm.xlu0 %267, %v221
    %v269 = vpop.permute.xlu0 %268
    %270 = vset.pattern.permute.xlu0 0
    %271 = vperm.xlu0 %270, %v222
    %v272 = vpop.permute.xlu0 %271
    %273 = vset.pattern.permute.xlu0 0
    %274 = vperm.xlu0 %273, %v223
    %v275 = vpop.permute.xlu0 %274
    %276 = vset.pattern.permute.xlu0 0
    %277 = vperm.xlu0 %276, %v224
    %v278 = vpop.permute.xlu0 %277
    %279 = vset.pattern.permute.xlu0 0
    %280 = vperm.xlu0 %279, %v225
    %v281 = vpop.permute.xlu0 %280
    %282 = vset.pattern.permute.xlu0 0
    %283 = vperm.xlu0 %282, %v226
    %v284 = vpop.permute.xlu0 %283
    %285 = vset.pattern.permute.xlu0 0
    %286 = vperm.xlu0 %285, %v227
    %v287 = vpop.permute.xlu0 %286
    %288 = vset.pattern.permute.xlu0 0
    %289 = vperm.xlu0 %288, %v228
    %v290 = vpop.permute.xlu0 %289
    %291 = vset.pattern.permute.xlu0 0
    %292 = vperm.xlu0 %291, %v229
    %v293 = vpop.permute.xlu0 %292
    %v294 = vlaneseq
    %v295 = vand.u32 %v294, 127
    %v296 = vlaneseq
    %v297 = vshrl.u32 %v296, 7
    %v298 = vsub.s32 %v295, %v297
    %v299 = vrot.slane %v248, %v298
    %v300 = vadd.s32 %v295, 4294967288
    %v301 = vlaneseq
    %v302 = vshrl.u32 %v301, 7
    %v303 = vsub.s32 %v300, %v302
    %v304 = vrot.slane %v251, %v303
    %vm305 = vcmask 130112
    %v306 = vsel %vm305, %v304, %v299
    %v307 = vlaneseq
    %v308 = vshrl.u32 %v307, 7
    %v309 = vsub.s32 %v295, %v308
    %v310 = vrot.slane %v254, %v309
    %v311 = vlaneseq
    %v312 = vshrl.u32 %v311, 7
    %v313 = vsub.s32 %v300, %v312
    %v314 = vrot.slane %v257, %v313
    %v315 = vsel %vm305, %v314, %v310
    %v316 = vlaneseq
    %v317 = vshrl.u32 %v316, 7
    %v318 = vsub.s32 %v295, %v317
    %v319 = vrot.slane %v260, %v318
    %v320 = vlaneseq
    %v321 = vshrl.u32 %v320, 7
    %v322 = vsub.s32 %v300, %v321
    %v323 = vrot.slane %v263, %v322
    %v324 = vsel %vm305, %v323, %v319
    %v325 = vlaneseq
    %v326 = vshrl.u32 %v325, 7
    %v327 = vsub.s32 %v295, %v326
    %v328 = vrot.slane %v266, %v327
    %v329 = vlaneseq
    %v330 = vshrl.u32 %v329, 7
    %v331 = vsub.s32 %v300, %v330
    %v332 = vrot.slane %v269, %v331
    %v333 = vsel %vm305, %v332, %v328
    %v334 = vlaneseq
    %v335 = vshrl.u32 %v334, 7
    %v336 = vsub.s32 %v295, %v335
    %v337 = vrot.slane %v272, %v336
    %v338 = vlaneseq
    %v339 = vshrl.u32 %v338, 7
    %v340 = vsub.s32 %v300, %v339
    %v341 = vrot.slane %v275, %v340
    %v342 = vsel %vm305, %v341, %v337
    %v343 = vlaneseq
    %v344 = vshrl.u32 %v343, 7
    %v345 = vsub.s32 %v295, %v344
    %v346 = vrot.slane %v278, %v345
    %v347 = vlaneseq
    %v348 = vshrl.u32 %v347, 7
    %v349 = vsub.s32 %v300, %v348
    %v350 = vrot.slane %v281, %v349
    %v351 = vsel %vm305, %v350, %v346
    %v352 = vlaneseq
    %v353 = vshrl.u32 %v352, 7
    %v354 = vsub.s32 %v295, %v353
    %v355 = vrot.slane %v284, %v354
    %v356 = vlaneseq
    %v357 = vshrl.u32 %v356, 7
    %v358 = vsub.s32 %v300, %v357
    %v359 = vrot.slane %v287, %v358
    %v360 = vsel %vm305, %v359, %v355
    %v361 = vlaneseq
    %v362 = vshrl.u32 %v361, 7
    %v363 = vsub.s32 %v295, %v362
    %v364 = vrot.slane %v290, %v363
    %v365 = vlaneseq
    %v366 = vshrl.u32 %v365, 7
    %v367 = vsub.s32 %v300, %v366
    %v368 = vrot.slane %v293, %v367
    %v369 = vsel %vm305, %v368, %v364
    %vm370 = vcmask 1041409
    %v371 = vsel %vm370, %v315, %v306
    %vm372 = vcmask 1042434
    %v373 = vsel %vm372, %v324, %v371
    %vm374 = vcmask 1043459
    %v375 = vsel %vm374, %v333, %v373
    %vm376 = vcmask 1044484
    %v377 = vsel %vm376, %v342, %v375
    %vm378 = vcmask 1045509
    %v379 = vsel %vm378, %v351, %v377
    %vm380 = vcmask 1046534
    %v381 = vsel %vm380, %v360, %v379
    %vm382 = vcmask 1047559
    %v383 = vsel %vm382, %v369, %v381
    %v385 = vsel %vm102, %v383, -inf
    %386 = vmax.xlane.f32.xlu0 %v385
    %v387 = vpop.xlane.xlu0 %386
    %v389 = vlaneseq
    %v390 = vshrl.u32 %v389, 7
    %v391 = vsub.s32 0, %v390
    %v392 = vrot.slane %v387, %v391
    %v393 = vlaneseq
    %v394 = vshrl.u32 %v393, 7
    %v395 = vsub.s32 1, %v394
    %v396 = vrot.slane %v387, %v395
    %v397 = vlaneseq
    %v398 = vshrl.u32 %v397, 7
    %v399 = vsub.s32 2, %v398
    %v400 = vrot.slane %v387, %v399
    %v401 = vlaneseq
    %v402 = vshrl.u32 %v401, 7
    %v403 = vsub.s32 3, %v402
    %v404 = vrot.slane %v387, %v403
    %v405 = vlaneseq
    %v406 = vshrl.u32 %v405, 7
    %v407 = vsub.s32 4, %v406
    %v408 = vrot.slane %v387, %v407
    %v409 = vlaneseq
    %v410 = vshrl.u32 %v409, 7
    %v411 = vsub.s32 5, %v410
    %v412 = vrot.slane %v387, %v411
    %v413 = vlaneseq
    %v414 = vshrl.u32 %v413, 7
    %v415 = vsub.s32 6, %v414
    %v416 = vrot.slane %v387, %v415
    %v417 = vlaneseq
    %v418 = vshrl.u32 %v417, 7
    %v419 = vsub.s32 7, %v418
    %v420 = vrot.slane %v387, %v419
    %v429 = vsub.f32 %v214, %v392
    %v430 = vsub.f32 %v215, %v392
    %v431 = vsub.f32 %v216, %v396
    %v432 = vsub.f32 %v217, %v396
    %v433 = vsub.f32 %v218, %v400
    %v434 = vsub.f32 %v219, %v400
    %v435 = vsub.f32 %v220, %v404
    %v436 = vsub.f32 %v221, %v404
    %v437 = vsub.f32 %v222, %v408
    %v438 = vsub.f32 %v223, %v408
    %v439 = vsub.f32 %v224, %v412
    %v440 = vsub.f32 %v225, %v412
    %v441 = vsub.f32 %v226, %v416
    %v442 = vsub.f32 %v227, %v416
    %v443 = vsub.f32 %v228, %v420
    %v444 = vsub.f32 %v229, %v420
    %v445 = vmul.f32 %v429, 1.442695
    %v446 = vpow.pop %v445
    %v447 = vmul.f32 %v430, 1.442695
    %v448 = vpow.pop %v447
    %v449 = vmul.f32 %v431, 1.442695
    %v450 = vpow.pop %v449
    %v451 = vmul.f32 %v432, 1.442695
    %v452 = vpow.pop %v451
    %v453 = vmul.f32 %v433, 1.442695
    %v454 = vpow.pop %v453
    %v455 = vmul.f32 %v434, 1.442695
    %v456 = vpow.pop %v455
    %v457 = vmul.f32 %v435, 1.442695
    %v458 = vpow.pop %v457
    %v459 = vmul.f32 %v436, 1.442695
    %v460 = vpow.pop %v459
    %v461 = vmul.f32 %v437, 1.442695
    %v462 = vpow.pop %v461
    %v463 = vmul.f32 %v438, 1.442695
    %v464 = vpow.pop %v463
    %v465 = vmul.f32 %v439, 1.442695
    %v466 = vpow.pop %v465
    %v467 = vmul.f32 %v440, 1.442695
    %v468 = vpow.pop %v467
    %v469 = vmul.f32 %v441, 1.442695
    %v470 = vpow.pop %v469
    %v471 = vmul.f32 %v442, 1.442695
    %v472 = vpow.pop %v471
    %v473 = vmul.f32 %v443, 1.442695
    %v474 = vpow.pop %v473
    %v475 = vmul.f32 %v444, 1.442695
    %v476 = vpow.pop %v475
    %493 = vset.pattern.permute.xlu0 0
    %494 = vperm.xlu0 %493, %v446
    %v495 = vpop.permute.xlu0 %494
    %496 = vset.pattern.permute.xlu0 0
    %497 = vperm.xlu0 %496, %v448
    %v498 = vpop.permute.xlu0 %497
    %499 = vset.pattern.permute.xlu0 0
    %500 = vperm.xlu0 %499, %v450
    %v501 = vpop.permute.xlu0 %500
    %502 = vset.pattern.permute.xlu0 0
    %503 = vperm.xlu0 %502, %v452
    %v504 = vpop.permute.xlu0 %503
    %505 = vset.pattern.permute.xlu0 0
    %506 = vperm.xlu0 %505, %v454
    %v507 = vpop.permute.xlu0 %506
    %508 = vset.pattern.permute.xlu0 0
    %509 = vperm.xlu0 %508, %v456
    %v510 = vpop.permute.xlu0 %509
    %511 = vset.pattern.permute.xlu0 0
    %512 = vperm.xlu0 %511, %v458
    %v513 = vpop.permute.xlu0 %512
    %514 = vset.pattern.permute.xlu0 0
    %515 = vperm.xlu0 %514, %v460
    %v516 = vpop.permute.xlu0 %515
    %517 = vset.pattern.permute.xlu0 0
    %518 = vperm.xlu0 %517, %v462
    %v519 = vpop.permute.xlu0 %518
    %520 = vset.pattern.permute.xlu0 0
    %521 = vperm.xlu0 %520, %v464
    %v522 = vpop.permute.xlu0 %521
    %523 = vset.pattern.permute.xlu0 0
    %524 = vperm.xlu0 %523, %v466
    %v525 = vpop.permute.xlu0 %524
    %526 = vset.pattern.permute.xlu0 0
    %527 = vperm.xlu0 %526, %v468
    %v528 = vpop.permute.xlu0 %527
    %529 = vset.pattern.permute.xlu0 0
    %530 = vperm.xlu0 %529, %v470
    %v531 = vpop.permute.xlu0 %530
    %532 = vset.pattern.permute.xlu0 0
    %533 = vperm.xlu0 %532, %v472
    %v534 = vpop.permute.xlu0 %533
    %535 = vset.pattern.permute.xlu0 0
    %536 = vperm.xlu0 %535, %v474
    %v537 = vpop.permute.xlu0 %536
    %538 = vset.pattern.permute.xlu0 0
    %539 = vperm.xlu0 %538, %v476
    %v540 = vpop.permute.xlu0 %539
    %v541 = vlaneseq
    %v542 = vshrl.u32 %v541, 7
    %v543 = vsub.s32 %v295, %v542
    %v544 = vrot.slane %v495, %v543
    %v545 = vlaneseq
    %v546 = vshrl.u32 %v545, 7
    %v547 = vsub.s32 %v300, %v546
    %v548 = vrot.slane %v498, %v547
    %v549 = vsel %vm305, %v548, %v544
    %v550 = vlaneseq
    %v551 = vshrl.u32 %v550, 7
    %v552 = vsub.s32 %v295, %v551
    %v553 = vrot.slane %v501, %v552
    %v554 = vlaneseq
    %v555 = vshrl.u32 %v554, 7
    %v556 = vsub.s32 %v300, %v555
    %v557 = vrot.slane %v504, %v556
    %v558 = vsel %vm305, %v557, %v553
    %v559 = vlaneseq
    %v560 = vshrl.u32 %v559, 7
    %v561 = vsub.s32 %v295, %v560
    %v562 = vrot.slane %v507, %v561
    %v563 = vlaneseq
    %v564 = vshrl.u32 %v563, 7
    %v565 = vsub.s32 %v300, %v564
    %v566 = vrot.slane %v510, %v565
    %v567 = vsel %vm305, %v566, %v562
    %v568 = vlaneseq
    %v569 = vshrl.u32 %v568, 7
    %v570 = vsub.s32 %v295, %v569
    %v571 = vrot.slane %v513, %v570
    %v572 = vlaneseq
    %v573 = vshrl.u32 %v572, 7
    %v574 = vsub.s32 %v300, %v573
    %v575 = vrot.slane %v516, %v574
    %v576 = vsel %vm305, %v575, %v571
    %v577 = vlaneseq
    %v578 = vshrl.u32 %v577, 7
    %v579 = vsub.s32 %v295, %v578
    %v580 = vrot.slane %v519, %v579
    %v581 = vlaneseq
    %v582 = vshrl.u32 %v581, 7
    %v583 = vsub.s32 %v300, %v582
    %v584 = vrot.slane %v522, %v583
    %v585 = vsel %vm305, %v584, %v580
    %v586 = vlaneseq
    %v587 = vshrl.u32 %v586, 7
    %v588 = vsub.s32 %v295, %v587
    %v589 = vrot.slane %v525, %v588
    %v590 = vlaneseq
    %v591 = vshrl.u32 %v590, 7
    %v592 = vsub.s32 %v300, %v591
    %v593 = vrot.slane %v528, %v592
    %v594 = vsel %vm305, %v593, %v589
    %v595 = vlaneseq
    %v596 = vshrl.u32 %v595, 7
    %v597 = vsub.s32 %v295, %v596
    %v598 = vrot.slane %v531, %v597
    %v599 = vlaneseq
    %v600 = vshrl.u32 %v599, 7
    %v601 = vsub.s32 %v300, %v600
    %v602 = vrot.slane %v534, %v601
    %v603 = vsel %vm305, %v602, %v598
    %v604 = vlaneseq
    %v605 = vshrl.u32 %v604, 7
    %v606 = vsub.s32 %v295, %v605
    %v607 = vrot.slane %v537, %v606
    %v608 = vlaneseq
    %v609 = vshrl.u32 %v608, 7
    %v610 = vsub.s32 %v300, %v609
    %v611 = vrot.slane %v540, %v610
    %v612 = vsel %vm305, %v611, %v607
    %v613 = vsel %vm370, %v558, %v549
    %v614 = vsel %vm372, %v567, %v613
    %v615 = vsel %vm374, %v576, %v614
    %v616 = vsel %vm376, %v585, %v615
    %v617 = vsel %vm378, %v594, %v616
    %v618 = vsel %vm380, %v603, %v617
    %v619 = vsel %vm382, %v612, %v618
    %v621 = vsel %vm102, %v619, 0.0
    %622 = vadd.xlane.f32.xlu0 %v621
    %v623 = vpop.xlane.xlu0 %622
    %v624 = vrcp.pop %v623
    %v626 = vlaneseq
    %v627 = vshrl.u32 %v626, 7
    %v628 = vsub.s32 0, %v627
    %v629 = vrot.slane %v624, %v628
    %v630 = vlaneseq
    %v631 = vshrl.u32 %v630, 7
    %v632 = vsub.s32 1, %v631
    %v633 = vrot.slane %v624, %v632
    %v634 = vlaneseq
    %v635 = vshrl.u32 %v634, 7
    %v636 = vsub.s32 2, %v635
    %v637 = vrot.slane %v624, %v636
    %v638 = vlaneseq
    %v639 = vshrl.u32 %v638, 7
    %v640 = vsub.s32 3, %v639
    %v641 = vrot.slane %v624, %v640
    %v642 = vlaneseq
    %v643 = vshrl.u32 %v642, 7
    %v644 = vsub.s32 4, %v643
    %v645 = vrot.slane %v624, %v644
    %v646 = vlaneseq
    %v647 = vshrl.u32 %v646, 7
    %v648 = vsub.s32 5, %v647
    %v649 = vrot.slane %v624, %v648
    %v650 = vlaneseq
    %v651 = vshrl.u32 %v650, 7
    %v652 = vsub.s32 6, %v651
    %v653 = vrot.slane %v624, %v652
    %v654 = vlaneseq
    %v655 = vshrl.u32 %v654, 7
    %v656 = vsub.s32 7, %v655
    %v657 = vrot.slane %v624, %v656
    %v666 = vmul.f32 %v446, %v629
    %v667 = vmul.f32 %v448, %v629
    %v668 = vmul.f32 %v450, %v633
    %v669 = vmul.f32 %v452, %v633
    %v670 = vmul.f32 %v454, %v637
    %v671 = vmul.f32 %v456, %v637
    %v672 = vmul.f32 %v458, %v641
    %v673 = vmul.f32 %v460, %v641
    %v674 = vmul.f32 %v462, %v645
    %v675 = vmul.f32 %v464, %v645
    %v676 = vmul.f32 %v466, %v649
    %v677 = vmul.f32 %v468, %v649
    %v678 = vmul.f32 %v470, %v653
    %v679 = vmul.f32 %v472, %v653
    %v680 = vmul.f32 %v474, %v657
    %v681 = vmul.f32 %v476, %v657
    %v682 = vpack.c.bf16 %v667, %v666
    %v683 = vpack.c.bf16 %v669, %v668
    %v684 = vpack.c.bf16 %v671, %v670
    %v685 = vpack.c.bf16 %v673, %v672
    %v686 = vpack.c.bf16 %v675, %v674
    %v687 = vpack.c.bf16 %v677, %v676
    %v688 = vpack.c.bf16 %v679, %v678
    %v689 = vpack.c.bf16 %v681, %v680
    %v690 = vld [vmem:[#allocation2] sm:$0xf]
    %v691 = vld [vmem:[#allocation2 + $0x4] sm:$0xf]
    %v700 = vunpack.c.l.b16 %v682
    %v701 = vunpack.c.h.b16 %v682
    %v702 = vunpack.c.l.b16 %v683
    %v703 = vunpack.c.h.b16 %v683
    %v704 = vunpack.c.l.b16 %v684
    %v705 = vunpack.c.h.b16 %v684
    %v706 = vunpack.c.l.b16 %v685
    %v707 = vunpack.c.h.b16 %v685
    %v708 = vunpack.c.l.b16 %v686
    %v709 = vunpack.c.h.b16 %v686
    %v710 = vunpack.c.l.b16 %v687
    %v711 = vunpack.c.h.b16 %v687
    %v712 = vunpack.c.l.b16 %v688
    %v713 = vunpack.c.h.b16 %v688
    %v714 = vunpack.c.l.b16 %v689
    %v715 = vunpack.c.h.b16 %v689
    %716 = vset.pattern.permute.xlu0 0
    %717 = vperm.xlu0 %716, %v700
    %v718 = vpop.permute.xlu0 %717
    %719 = vset.pattern.permute.xlu0 0
    %720 = vperm.xlu0 %719, %v701
    %v721 = vpop.permute.xlu0 %720
    %722 = vset.pattern.permute.xlu0 0
    %723 = vperm.xlu0 %722, %v702
    %v724 = vpop.permute.xlu0 %723
    %725 = vset.pattern.permute.xlu0 0
    %726 = vperm.xlu0 %725, %v703
    %v727 = vpop.permute.xlu0 %726
    %728 = vset.pattern.permute.xlu0 0
    %729 = vperm.xlu0 %728, %v704
    %v730 = vpop.permute.xlu0 %729
    %731 = vset.pattern.permute.xlu0 0
    %732 = vperm.xlu0 %731, %v705
    %v733 = vpop.permute.xlu0 %732
    %734 = vset.pattern.permute.xlu0 0
    %735 = vperm.xlu0 %734, %v706
    %v736 = vpop.permute.xlu0 %735
    %737 = vset.pattern.permute.xlu0 0
    %738 = vperm.xlu0 %737, %v707
    %v739 = vpop.permute.xlu0 %738
    %740 = vset.pattern.permute.xlu0 0
    %741 = vperm.xlu0 %740, %v708
    %v742 = vpop.permute.xlu0 %741
    %743 = vset.pattern.permute.xlu0 0
    %744 = vperm.xlu0 %743, %v709
    %v745 = vpop.permute.xlu0 %744
    %746 = vset.pattern.permute.xlu0 0
    %747 = vperm.xlu0 %746, %v710
    %v748 = vpop.permute.xlu0 %747
    %749 = vset.pattern.permute.xlu0 0
    %750 = vperm.xlu0 %749, %v711
    %v751 = vpop.permute.xlu0 %750
    %752 = vset.pattern.permute.xlu0 0
    %753 = vperm.xlu0 %752, %v712
    %v754 = vpop.permute.xlu0 %753
    %755 = vset.pattern.permute.xlu0 0
    %756 = vperm.xlu0 %755, %v713
    %v757 = vpop.permute.xlu0 %756
    %758 = vset.pattern.permute.xlu0 0
    %759 = vperm.xlu0 %758, %v714
    %v760 = vpop.permute.xlu0 %759
    %761 = vset.pattern.permute.xlu0 0
    %762 = vperm.xlu0 %761, %v715
    %v763 = vpop.permute.xlu0 %762
    %v764 = vlaneseq
    %v765 = vshrl.u32 %v764, 7
    %v766 = vsub.s32 %v295, %v765
    %v767 = vrot.slane %v718, %v766
    %v768 = vlaneseq
    %v769 = vshrl.u32 %v768, 7
    %v770 = vsub.s32 %v300, %v769
    %v771 = vrot.slane %v721, %v770
    %v772 = vsel %vm305, %v771, %v767
    %v773 = vlaneseq
    %v774 = vshrl.u32 %v773, 7
    %v775 = vsub.s32 %v295, %v774
    %v776 = vrot.slane %v724, %v775
    %v777 = vlaneseq
    %v778 = vshrl.u32 %v777, 7
    %v779 = vsub.s32 %v300, %v778
    %v780 = vrot.slane %v727, %v779
    %v781 = vsel %vm305, %v780, %v776
    %v782 = vlaneseq
    %v783 = vshrl.u32 %v782, 7
    %v784 = vsub.s32 %v295, %v783
    %v785 = vrot.slane %v730, %v784
    %v786 = vlaneseq
    %v787 = vshrl.u32 %v786, 7
    %v788 = vsub.s32 %v300, %v787
    %v789 = vrot.slane %v733, %v788
    %v790 = vsel %vm305, %v789, %v785
    %v791 = vlaneseq
    %v792 = vshrl.u32 %v791, 7
    %v793 = vsub.s32 %v295, %v792
    %v794 = vrot.slane %v736, %v793
    %v795 = vlaneseq
    %v796 = vshrl.u32 %v795, 7
    %v797 = vsub.s32 %v300, %v796
    %v798 = vrot.slane %v739, %v797
    %v799 = vsel %vm305, %v798, %v794
    %v800 = vlaneseq
    %v801 = vshrl.u32 %v800, 7
    %v802 = vsub.s32 %v295, %v801
    %v803 = vrot.slane %v742, %v802
    %v804 = vlaneseq
    %v805 = vshrl.u32 %v804, 7
    %v806 = vsub.s32 %v300, %v805
    %v807 = vrot.slane %v745, %v806
    %v808 = vsel %vm305, %v807, %v803
    %v809 = vlaneseq
    %v810 = vshrl.u32 %v809, 7
    %v811 = vsub.s32 %v295, %v810
    %v812 = vrot.slane %v748, %v811
    %v813 = vlaneseq
    %v814 = vshrl.u32 %v813, 7
    %v815 = vsub.s32 %v300, %v814
    %v816 = vrot.slane %v751, %v815
    %v817 = vsel %vm305, %v816, %v812
    %v818 = vlaneseq
    %v819 = vshrl.u32 %v818, 7
    %v820 = vsub.s32 %v295, %v819
    %v821 = vrot.slane %v754, %v820
    %v822 = vlaneseq
    %v823 = vshrl.u32 %v822, 7
    %v824 = vsub.s32 %v300, %v823
    %v825 = vrot.slane %v757, %v824
    %v826 = vsel %vm305, %v825, %v821
    %v827 = vlaneseq
    %v828 = vshrl.u32 %v827, 7
    %v829 = vsub.s32 %v295, %v828
    %v830 = vrot.slane %v760, %v829
    %v831 = vlaneseq
    %v832 = vshrl.u32 %v831, 7
    %v833 = vsub.s32 %v300, %v832
    %v834 = vrot.slane %v763, %v833
    %v835 = vsel %vm305, %v834, %v830
    %v836 = vsel %vm370, %v781, %v772
    %v837 = vsel %vm372, %v790, %v836
    %v838 = vsel %vm374, %v799, %v837
    %v839 = vsel %vm376, %v808, %v838
    %v840 = vsel %vm378, %v817, %v839
    %v841 = vsel %vm380, %v826, %v840
    %v842 = vsel %vm382, %v835, %v841
    %v843 = vpack.c.b16 %v842, %v842
    %v846 = vunpack.c.l.b16 %v690
    %v847 = vunpack.c.l.b16 %v691
    %v848 = vpack.c.b16 %v847, %v846
    %v851 = vsel %vm102, %v843, 0
    %853 = vmatprep.subr.bf16.mxu0 0
    %854 = vmatpush1.bf16.msra.mxu0 0
    %855 = vmatprep.subr.bf16.mxu0 0
    %856 = vmatpush1.bf16.msra.mxu0 0
    %857 = vmatprep.subr.bf16.mxu0 0
    %858 = vmatpush1.bf16.msra.mxu0 0
    %859 = vmatprep.subr.bf16.mxu0 0
    %860 = vmatpush1.bf16.msra.mxu0 0
    %861 = vmatprep.subr.bf16.mxu0 0
    %862 = vmatpush1.bf16.msra.mxu0 0
    %863 = vmatprep.subr.bf16.mxu0 0
    %864 = vmatpush1.bf16.msra.mxu0 0
    %865 = vmatprep.subr.bf16.mxu0 0
    %866 = vmatpush1.bf16.msra.mxu0 0
    %867 = vmatprep.subr.bf16.mxu0 0
    %868 = vmatpush1.bf16.msra.mxu0 %v848
    %869 = vmatprep.subr.bf16.mxu0 0
    %870 = vmatpush2.bf16.msra.mxu0 0
    %871 = vmatprep.subr.bf16.mxu0 0
    %872 = vmatpush2.bf16.msra.mxu0 0
    %873 = vmatprep.subr.bf16.mxu0 0
    %874 = vmatpush2.bf16.msra.mxu0 0
    %875 = vmatprep.subr.bf16.mxu0 0
    %876 = vmatpush2.bf16.msra.mxu0 0
    %877 = vmatprep.subr.bf16.mxu0 0
    %878 = vmatpush2.bf16.msra.mxu0 0
    %879 = vmatprep.subr.bf16.mxu0 0
    %880 = vmatpush2.bf16.msra.mxu0 0
    %881 = vmatprep.subr.bf16.mxu0 0
    %882 = vmatpush2.bf16.msra.mxu0 0
    %883 = vmatprep.subr.bf16.mxu0 0
    %884 = vmatpush2.bf16.msra.mxu0 0
    %885 = vmatprep.mubr.bf16.mxu0 0
    %886 = vmatmul.mubr.bf16.gmra.mxu0 %v851
    %v887 = vpop.f32.mrf.mxu0
    %v888 = vadd.f32 0.0, %v887
    %v889 = vpop.f32.mrf.mxu0
    %v890 = vpop.f32.mrf.mxu0
    %v891 = vpop.f32.mrf.mxu0
    %892 = vdwg.mxu0
    %893 = vst [vmem:[#allocation7] sm:$0xff] %v888
    // Predicated region
    $region26: #{tpu_custom_call.1} parent=1 // pred_check
      _
    $region27: #{tpu_custom_call.1} parent=1 // pred_check_branch
      %895 = sbr.rel (0) target = $region29
    $region28: #{tpu_custom_call.1} parent=1 // pred_region
      %s897 = ssub.s32 128, 128
      %898 = vsyncadd [#allocation4], %s897
      %s900 = sshll.u32 [#allocation7], 4
      %s901 = int_to_ptr.vmem [resolvable:$true] %s900
      %903 = dma.vmem_to_hbm [thread:$0]  %s901, 128, %s4, [#allocation4]
    $region29: #{tpu_custom_call.1} parent=1 // pred_fallthru
      _
    // Predicated region
    $region30: #{tpu_custom_call.1} parent=1 // pred_check
      _
    $region31: #{tpu_custom_call.1} parent=1 // pred_check_branch
      %905 = sbr.rel (0) target = $region33
    $region32: #{tpu_custom_call.1} parent=1 // pred_region
      %906 = dma.done [#allocation4], 128
    $region33: #{tpu_custom_call.1} parent=1 // pred_fallthru
      _
    %907 = vsyncpa [#allocation3], 1
    %908 = vsyncpa [#allocation6], 1
    %909 = vsyncpa [#allocation4], 1

</llo_original>
